<compile_context>
chip_gen: v6e
topology: v6e:2x2x1
jax: 0.10.0
libtpu: 0.0.40
codegen_flags: <defaults>
</compile_context>

<pallas_src>
import functools

import jax
import jax.numpy as jnp
from jax.experimental import pallas as pl
from jax.experimental.pallas import tpu as pltpu


def _round_up(x, m):
    return (x + m - 1) // m * m


def categorical_actor_kernel(x_ref, w_ref, b_ref, logits_ref, action_ref):
    # x_ref: [TB, H]   w_ref: [H, A]   b_ref: [1, A]
    # logits_ref: [TB, A]   action_ref: [TB, 1]
    # MXU matmul with f32 accumulation (inputs may be f32 or bf16).
    raw = jnp.dot(x_ref[...], w_ref[...], preferred_element_type=jnp.float32)
    raw = raw + b_ref[...].astype(jnp.float32)  # broadcast bias over batch rows

    # Categorical(logits=raw).logits == raw - logsumexp(raw, -1)  (f32 epilogue).
    m = jnp.max(raw, axis=-1, keepdims=True)
    ex = jnp.exp(raw - m)
    lse = m + jnp.log(jnp.sum(ex, axis=-1, keepdims=True))
    logits_ref[...] = (raw - lse).astype(logits_ref.dtype)

    # Fused deterministic action head: first index attaining the row max
    # (matches argmax tie-breaking; exact float equality against the same m).
    tb, a = raw.shape
    col = jax.lax.broadcasted_iota(jnp.int32, (tb, a), 1)
    idx = jnp.where(raw == m, col, a)  # `a` is a static Python int, not a captured array
    action_ref[...] = jnp.min(idx, axis=-1, keepdims=True).astype(jnp.int32)


def prepare_params(weight, bias, *, param_dtype=None):
    """One-time (init) parameter prep, hoisted out of the forward path.

    weight: [H, A] (transpose of torch's [A, H]); bias: [A].
    Returns (weight [H, A] in param_dtype, bias [1, A] f32).
    """
    if param_dtype is not None:
        weight = weight.astype(param_dtype)
    bias2 = bias.reshape(1, -1).astype(jnp.float32)
    return weight, bias2


def _choose_tile_b(batch, align, cap):
    """Batch tile: multiple of `align`, capped at `cap`, and (when the batch is
    large enough) chosen so there are >= 2 grid steps (v7x has 2 TensorCores)."""
    if batch <= align:
        return batch  # single tiny tile; block dim == full array dim is legal
    half = _round_up(pl.cdiv(batch, 2), align)
    return max(align, min(cap, half))


def categorical_actor_forward(feature, weight, bias2, *, tile_b=1024,
                              logits_dtype=jnp.float32):
    """feature: [B, H]; weight: [H, A]; bias2: [1, A] (from prepare_params).

    Returns (logits [B, A] normalized log-probs, action [B] int32 argmax).
    """
    B, H = feature.shape
    H2, A = weight.shape
    assert H == H2 and bias2.shape == (1, A)

    # bf16 packs 16 rows per vreg sublane group; f32 packs 8.
    align = 16 if feature.dtype == jnp.bfloat16 else 8
    TB = _choose_tile_b(B, align, tile_b)
    grid = (pl.cdiv(B, TB),)  # ragged last tile is fine: OOB stores are discarded

    itemsize_x = jnp.dtype(feature.dtype).itemsize
    itemsize_w = jnp.dtype(weight.dtype).itemsize
    itemsize_o = jnp.dtype(logits_dtype).itemsize

    cost = pl.CostEstimate(
        flops=2 * B * H * A,
        transcendentals=B * A,
        bytes_accessed=itemsize_x * B * H + itemsize_w * H * A + 4 * A
        + itemsize_o * B * A + 4 * B,
    )

    # Scoped-VMEM budget: double-buffered feature tile + resident params + outputs,
    # with headroom.  Keeps large-H configs compiling under v5e's smaller default.
    vmem_est = (2 * TB * H * itemsize_x
                + 2 * (H * A * itemsize_w + 4 * A)
                + 2 * (TB * A * itemsize_o + TB * 4))
    vmem_limit = int(min(64 * 1024 * 1024, max(4 * 1024 * 1024, 2 * vmem_est + (1 << 20))))

    logits, action2d = pl.pallas_call(
        categorical_actor_kernel,
        grid=grid,
        in_specs=[
            pl.BlockSpec((TB, H), lambda i: (i, 0)),   # feature: tiled over batch
            pl.BlockSpec((H, A), lambda i: (0, 0)),    # weight: resident in VMEM
            pl.BlockSpec((1, A), lambda i: (0, 0)),    # bias:   resident in VMEM
        ],
        out_specs=(
            pl.BlockSpec((TB, A), lambda i: (i, 0)),   # narrow logits writeback
            pl.BlockSpec((TB, 1), lambda i: (i, 0)),   # fused argmax action
        ),
        out_shape=(
            jax.ShapeDtypeStruct((B, A), logits_dtype),
            jax.ShapeDtypeStruct((B, 1), jnp.int32),
        ),
        compiler_params=pltpu.CompilerParams(
            dimension_semantics=("parallel",),          # shard batch tiles across TCs
            vmem_limit_bytes=vmem_limit,
        ),
        cost_estimate=cost,
    )(feature, weight, bias2)

    return logits, action2d.reshape(B)


def reference_forward(feature, weight, bias):
    raw = feature.astype(jnp.float32) @ weight.astype(jnp.float32) + bias.astype(jnp.float32)
    return raw - jax.scipy.special.logsumexp(raw, axis=-1, keepdims=True)


if __name__ == "__main__":
    # Shapes implied by the module: feature [B, hidden_dim], fc: hidden_dim -> n_act.
    batch = 8
    hidden_dim = 32
    n_act = 6

    key = jax.random.PRNGKey(0)
    k_feat, k_w, k_b = jax.random.split(key, 3)

    feature = jax.random.normal(k_feat, (batch, hidden_dim), dtype=jnp.float32)

    # Deterministic parameter init (mimics nn.Linear's U(-1/sqrt(H), 1/sqrt(H))).
    bound = 1.0 / jnp.sqrt(jnp.float32(hidden_dim))
    weight = jax.random.uniform(
        k_w, (hidden_dim, n_act), minval=-bound, maxval=bound, dtype=jnp.float32
    )
    bias = jax.random.uniform(
        k_b, (n_act,), minval=-bound, maxval=bound, dtype=jnp.float32
    )

    # --- f32 path (params prepped once, outside the forward) ---
    w_f32, b2 = prepare_params(weight, bias)
    logits, action = categorical_actor_forward(feature, w_f32, b2)
    jax.block_until_ready(logits)
    jax.block_until_ready(action)

    ref = reference_forward(feature, weight, bias)
    assert logits.shape == (batch, n_act) and action.shape == (batch,)
    assert jnp.allclose(logits, ref, atol=1e-5, rtol=1e-5), "logits mismatch vs reference"
    # Normalized logits must exponentiate to a valid probability distribution.
    assert jnp.allclose(jnp.sum(jnp.exp(logits), axis=-1), 1.0, atol=1e-5)
    # Fused deterministic action head == get_action(deterministic=True).
    assert jnp.array_equal(action, jnp.argmax(ref, axis=-1).astype(jnp.int32))

    # --- bf16 matmul operands (halves the dominant feature HBM stream; MXU
    #     runs at native bf16 rate on v6e/v7x; epilogue stays f32) ---
    w_bf16, b2_bf16 = prepare_params(weight, bias, param_dtype=jnp.bfloat16)
    feature_bf16 = feature.astype(jnp.bfloat16)
    logits_bf16, action_bf16 = categorical_actor_forward(feature_bf16, w_bf16, b2_bf16)
    jax.block_until_ready(logits_bf16)
    ref_bf16 = reference_forward(feature_bf16.astype(jnp.float32),
                                 w_bf16.astype(jnp.float32), bias)
    assert jnp.allclose(logits_bf16, ref_bf16, atol=1e-2, rtol=1e-2)
    assert jnp.allclose(jnp.sum(jnp.exp(logits_bf16), axis=-1), 1.0, atol=1e-4)

    # TODO(synk): pi.sample() (stochastic action) is left to jax.random.categorical in
    # the wrapper; a Gumbel-argmax using pltpu.prng_random_bits could be fused later.

    print("KERNEL_OK")
</pallas_src>

<mosaic_0001>
module attributes {stable_mosaic.version = 11 : i64} {
  func.func @categorical_actor_kernel(%arg0: i32, %arg1: memref<8x32xf32, #tpu.memory_space<vmem>>, %arg2: memref<32x6xf32, #tpu.memory_space<vmem>>, %arg3: memref<1x6xf32, #tpu.memory_space<vmem>>, %arg4: memref<8x6xf32, #tpu.memory_space<vmem>>, %arg5: memref<8x1xi32, #tpu.memory_space<vmem>>) attributes {dimension_semantics = [#tpu.dimension_semantics<parallel>], iteration_bounds = array<i64: 1>, scalar_prefetch = 0 : i64, scratch_operands = 0 : i64, tpu.core_type = #tpu.core_type<tc>, window_params = [{transform_indices = @transform_0, window_bounds = array<i64: 8, 32>}, {pipeline_mode = #tpu.pipeline_mode<synchronous>, transform_indices = @transform_1, window_bounds = array<i64: 32, 6>}, {pipeline_mode = #tpu.pipeline_mode<synchronous>, transform_indices = @transform_2, window_bounds = array<i64: 1, 6>}, {transform_indices = @transform_3, window_bounds = array<i64: 8, 6>}, {transform_indices = @transform_4, window_bounds = array<i64: 8, 1>}]} {
    %c0 = arith.constant 0 : index
    %c0_0 = arith.constant 0 : index
    %0 = vector.load %arg1[%c0, %c0_0] : memref<8x32xf32, #tpu.memory_space<vmem>>, vector<8x32xf32>
    %c0_1 = arith.constant 0 : index
    %c0_2 = arith.constant 0 : index
    %1 = vector.load %arg2[%c0_1, %c0_2] : memref<32x6xf32, #tpu.memory_space<vmem>>, vector<32x6xf32>
    %cst = arith.constant dense<0.000000e+00> : vector<8x6xf32>
    %2 = tpu.matmul %0, %1, %cst {dimension_numbers = #tpu.dot_dimension_numbers<[1], [0], [0], [1], [0, 0, 1, 1], [], []>} : vector<8x32xf32>, vector<32x6xf32>, vector<8x6xf32> -> vector<8x6xf32>
    %c0_3 = arith.constant 0 : index
    %c0_4 = arith.constant 0 : index
    %3 = vector.load %arg3[%c0_3, %c0_4] : memref<1x6xf32, #tpu.memory_space<vmem>>, vector<1x6xf32>
    %4 = vector.broadcast %3 : vector<1x6xf32> to vector<8x6xf32>
    %5 = arith.addf %2, %4 : vector<8x6xf32>
    %cst_5 = arith.constant dense<0xFF800000> : vector<8xf32>
    %6 = vector.multi_reduction <maximumf>, %5, %cst_5 [1] : vector<8x6xf32> to vector<8xf32>
    %7 = vector.shape_cast %6 : vector<8xf32> to vector<8x1xf32>
    %8 = vector.broadcast %7 : vector<8x1xf32> to vector<8x6xf32>
    %9 = arith.subf %5, %8 : vector<8x6xf32>
    %10 = math.exp %9 : vector<8x6xf32>
    %cst_6 = arith.constant dense<0.000000e+00> : vector<8xf32>
    %11 = vector.multi_reduction <add>, %10, %cst_6 [1] : vector<8x6xf32> to vector<8xf32>
    %12 = vector.shape_cast %11 : vector<8xf32> to vector<8x1xf32>
    %13 = math.log %12 : vector<8x1xf32>
    %14 = arith.addf %7, %13 : vector<8x1xf32>
    %15 = vector.broadcast %14 : vector<8x1xf32> to vector<8x6xf32>
    %16 = arith.subf %5, %15 : vector<8x6xf32>
    %c0_7 = arith.constant 0 : index
    %c0_8 = arith.constant 0 : index
    %17 = vector.load %arg4[%c0_7, %c0_8] : memref<8x6xf32, #tpu.memory_space<vmem>>, vector<8x6xf32>
    tpu.vector_store %arg4[%c0_7, %c0_8], %16 {strides = array<i32>} : memref<8x6xf32, #tpu.memory_space<vmem>>, vector<8x6xf32>,
    %18 = tpu.iota {dimensions = array<i32: 1>} : vector<8x6xi32>
    %19 = vector.broadcast %7 : vector<8x1xf32> to vector<8x6xf32>
    %20 = arith.cmpf oeq, %5, %19 : vector<8x6xf32>
    %c6_i32 = arith.constant 6 : i32
    %21 = vector.broadcast %c6_i32 : i32 to vector<8x6xi32>
    %22 = arith.select %20, %18, %21 : vector<8x6xi1>, vector<8x6xi32>
    %cst_9 = arith.constant dense<2147483647> : vector<8xi32>
    %23 = vector.multi_reduction <minsi>, %22, %cst_9 [1] : vector<8x6xi32> to vector<8xi32>
    %24 = vector.shape_cast %23 : vector<8xi32> to vector<8x1xi32>
    %c0_10 = arith.constant 0 : index
    %c0_11 = arith.constant 0 : index
    %25 = vector.load %arg5[%c0_10, %c0_11] : memref<8x1xi32, #tpu.memory_space<vmem>>, vector<8x1xi32>
    tpu.vector_store %arg5[%c0_10, %c0_11], %24 {strides = array<i32>} : memref<8x1xi32, #tpu.memory_space<vmem>>, vector<8x1xi32>,
    return
  }
  func.func @transform_0(%arg0: i32) -> (i32, i32) {
    %c0_i32 = arith.constant 0 : i32
    %c0_i32_0 = arith.constant 0 : i32
    return %arg0, %c0_i32 : i32, i32
  }
  func.func @transform_1(%arg0: i32) -> (i32, i32) {
    %c0_i32 = arith.constant 0 : i32
    %c0_i32_0 = arith.constant 0 : i32
    %c0_i32_1 = arith.constant 0 : i32
    return %c0_i32, %c0_i32_0 : i32, i32
  }
  func.func @transform_2(%arg0: i32) -> (i32, i32) {
    %c0_i32 = arith.constant 0 : i32
    %c0_i32_0 = arith.constant 0 : i32
    %c0_i32_1 = arith.constant 0 : i32
    return %c0_i32, %c0_i32_0 : i32, i32
  }
  func.func @transform_3(%arg0: i32) -> (i32, i32) {
    %c0_i32 = arith.constant 0 : i32
    %c0_i32_0 = arith.constant 0 : i32
    return %arg0, %c0_i32 : i32, i32
  }
  func.func @transform_4(%arg0: i32) -> (i32, i32) {
    %c0_i32 = arith.constant 0 : i32
    %c0_i32_0 = arith.constant 0 : i32
    return %arg0, %c0_i32 : i32, i32
  }
}

</mosaic_0001>

<llo_original>
// kernel: tpu_custom_call.1
$region0: #{tpu_custom_call.1}
  #allocation0 [shape = 'u32[]', space=smem, size = 0x4, offset = 0x4, fixed_abs, tag = 'smem constant byte address 0x4 - core index']
  #allocation1 [shape = 'u32[144,128]{1,0:T(1,128)}', space=vmem, size = 0x12000, scoped, tag = 'internal scratch']
  %s0 = inlined_call_operand.vmem [shape: f32[8,32], index: 0, kind: input, shape index: {}]
  %s1 = inlined_call_operand.vmem [shape: f32[32,6], index: 1, kind: input, shape index: {}]
  %s2 = inlined_call_operand.vmem [shape: f32[1,6], index: 2, kind: input, shape index: {}]
  %s3 = inlined_call_operand.hbm [shape: f32[8,6], index: 3, kind: output, shape index: {0}]
  %s4 = inlined_call_operand.vmem [shape: s32[8,1], index: 4, kind: output, shape index: {1}]
  %5 = xla_tuple %s3, %s4
  %s6 = sld [smem:[#allocation0]]
  $region30: #{tpu_custom_call.1} parent=0
    _
  %s8 = ssub.s32 1, %s6
  %s9 = scalar_select 0, %s8, %s6
  $region1: #{tpu_custom_call.1} parent=0
    #allocation2 [shape = 'u8[4096]{0}', space=vmem, size = 0x1000, scoped, tag = 'output window, operand 0, single buffered']
    #allocation3 [shape = 's32[1]{0}', space=sflag, size = 0x4, scoped, tag = 'scoped memory for tpu_custom_call.1']
    %10 = vsyncpa [#allocation3], 0
    // Predicated region
    $region2: #{tpu_custom_call.1} parent=1 // pred_check
      _
    $region3: #{tpu_custom_call.1} parent=1 // pred_check_branch
      %12 = sbr.rel (0) target = $region5
    $region4: #{tpu_custom_call.1} parent=1 // pred_region
      _
    $region5: #{tpu_custom_call.1} parent=1 // pred_fallthru
      _
    // Predicated region
    $region6: #{tpu_custom_call.1} parent=1 // pred_check
      _
    $region7: #{tpu_custom_call.1} parent=1 // pred_check_branch
      %14 = sbr.rel (0) target = $region9
    $region8: #{tpu_custom_call.1} parent=1 // pred_region
      _
    $region9: #{tpu_custom_call.1} parent=1 // pred_fallthru
      _
    // Predicated region
    $region10: #{tpu_custom_call.1} parent=1 // pred_check
      _
    $region11: #{tpu_custom_call.1} parent=1 // pred_check_branch
      %16 = sbr.rel (0) target = $region13
    $region12: #{tpu_custom_call.1} parent=1 // pred_region
      _
    $region13: #{tpu_custom_call.1} parent=1 // pred_fallthru
      _
    %v17 = vld [vmem:[%s0] sm:$0xff]
    %v18 = vld [vmem:[%s1] sm:$0xff]
    %v19 = vld [vmem:[%s1 + $0x8] sm:$0xff]
    %v20 = vld [vmem:[%s1 + $0x10] sm:$0xff]
    %v21 = vld [vmem:[%s1 + $0x18] sm:$0xff]
    %v22 = vld [vmem:[%s2] sm:$0x1]
    %v24 = vlaneseq
    %v25 = vshrl.u32 %v24, 7
    %v26 = vsub.s32 0, %v25
    %v27 = vrot.slane %v22, %v26
    %vm29 = vcmask 261120
    %v31 = vsel %vm29, %v17, 0
    %33 = vmatprep.subr.mxu0 0.0
    %34 = vmatpush1.msra.mxu0 0.0
    %35 = vmatprep.subr.mxu0 0.0
    %36 = vmatpush1.msra.mxu0 0.0
    %37 = vmatprep.subr.mxu0 0.0
    %38 = vmatpush1.msra.mxu0 0.0
    %39 = vmatprep.subr.mxu0 0.0
    %40 = vmatpush1.msra.mxu0 0.0
    %41 = vmatprep.subr.mxu0 0.0
    %42 = vmatpush1.msra.mxu0 0.0
    %43 = vmatprep.subr.mxu0 0.0
    %44 = vmatpush1.msra.mxu0 0.0
    %45 = vmatprep.subr.mxu0 0.0
    %46 = vmatpush1.msra.mxu0 0.0
    %47 = vmatprep.subr.mxu0 0.0
    %48 = vmatpush1.msra.mxu0 0.0
    %49 = vmatprep.subr.mxu0 0.0
    %50 = vmatpush1.msra.mxu0 0.0
    %51 = vmatprep.subr.mxu0 0.0
    %52 = vmatpush1.msra.mxu0 0.0
    %53 = vmatprep.subr.mxu0 0.0
    %54 = vmatpush1.msra.mxu0 0.0
    %55 = vmatprep.subr.mxu0 0.0
    %56 = vmatpush1.msra.mxu0 0.0
    %57 = vmatprep.subr.mxu0 0.0
    %58 = vmatpush1.msra.mxu0 %v21
    %59 = vmatprep.subr.mxu0 0.0
    %60 = vmatpush1.msra.mxu0 %v20
    %61 = vmatprep.subr.mxu0 0.0
    %62 = vmatpush1.msra.mxu0 %v19
    %63 = vmatprep.subr.mxu0 0.0
    %64 = vmatpush1.msra.mxu0 %v18
    %65 = vmatprep.subr.mxu0 0.0
    %66 = vmatpush2.msra.mxu0 0.0
    %67 = vmatprep.subr.mxu0 0.0
    %68 = vmatpush2.msra.mxu0 0.0
    %69 = vmatprep.subr.mxu0 0.0
    %70 = vmatpush2.msra.mxu0 0.0
    %71 = vmatprep.subr.mxu0 0.0
    %72 = vmatpush2.msra.mxu0 0.0
    %73 = vmatprep.subr.mxu0 0.0
    %74 = vmatpush2.msra.mxu0 0.0
    %75 = vmatprep.subr.mxu0 0.0
    %76 = vmatpush2.msra.mxu0 0.0
    %77 = vmatprep.subr.mxu0 0.0
    %78 = vmatpush2.msra.mxu0 0.0
    %79 = vmatprep.subr.mxu0 0.0
    %80 = vmatpush2.msra.mxu0 0.0
    %81 = vmatprep.subr.mxu0 0.0
    %82 = vmatpush2.msra.mxu0 0.0
    %83 = vmatprep.subr.mxu0 0.0
    %84 = vmatpush2.msra.mxu0 0.0
    %85 = vmatprep.subr.mxu0 0.0
    %86 = vmatpush2.msra.mxu0 0.0
    %87 = vmatprep.subr.mxu0 0.0
    %88 = vmatpush2.msra.mxu0 0.0
    %89 = vmatprep.subr.mxu0 0.0
    %90 = vmatpush2.msra.mxu0 0.0
    %91 = vmatprep.subr.mxu0 0.0
    %92 = vmatpush2.msra.mxu0 0.0
    %93 = vmatprep.subr.mxu0 0.0
    %94 = vmatpush2.msra.mxu0 0.0
    %95 = vmatprep.subr.mxu0 0.0
    %96 = vmatpush2.msra.mxu0 0.0
    %97 = vmatprep.mubr.f32.mxu0 0.0
    %98 = vmatmul.mubr.f32.gmra.mxu0 %v31
    %v99 = vpop.f32.mrf.mxu0
    %v100 = vadd.f32 %v27, %v99
    %v101 = vpop.f32.mrf.mxu0
    %102 = vdwg.mxu0
    %vm103 = vcmask 48128
    %v104 = vsel %vm103, %v100, -inf
    %105 = vmax.xlane.f32.xlu0 %v104
    %v106 = vpop.xlane.xlu0 %105
    %v107 = vsub.f32 %v100, %v106
    %v108 = vmul.f32 %v107, 1.442695
    %v109 = vpow.pop %v108
    %v110 = vsel %vm103, %v109, 0.0
    %111 = vadd.xlane.f32.xlu0 %v110
    %v112 = vpop.xlane.xlu0 %111
    %v113 = vlog2.pop %v112
    %v114 = vmul.f32 %v113, 0.6931472
    %v115 = vadd.f32 %v106, %v114
    %v116 = vsub.f32 %v100, %v115
    %117 = vst.msk [vmem:[#allocation2] sm:$0xff] %vm103, %v116
    %v118 = vlaneseq
    %v119 = vand.u32 %v118, 127
    %vm120 = vcmp.eq.f32.partialorder %v100, %v106
    %v121 = vsel %vm120, %v119, 6
    %v122 = vsel %vm103, %v121, 2147483647
    %v123 = vand.u32 %v122, 65535
    %v124 = vshra.s32 %v122, 16
    %v125 = vcvt.s32.f32 %v123
    %v126 = vcvt.s32.f32 %v124
    %127 = vmin.xlane.f32.xlu0 %v126
    %v128 = vpop.xlane.xlu0 %127
    %vm129 = vcmp.eq.f32.partialorder %v126, %v128
    %v130 = vsel %vm129, %v125, inf
    %131 = vmin.xlane.f32.xlu0 %v130
    %v132 = vpop.xlane.xlu0 %131
    %v133 = vcvt.f32.s32 %v132
    %v134 = vcvt.f32.s32 %v128
    %v135 = vshll.u32 %v134, 16
    %v136 = vadd.s32 %v135, %v133
    %vm137 = vcmask 7168
    %138 = vst.msk [vmem:[%s4] sm:$0xff] %vm137, %v136
    // Predicated region
    $region14: #{tpu_custom_call.1} parent=1 // pred_check
      _
    $region15: #{tpu_custom_call.1} parent=1 // pred_check_branch
      %140 = sbr.rel (0) target = $region17
    $region16: #{tpu_custom_call.1} parent=1 // pred_region
      %s142 = ssub.s32 128, 128
      %143 = vsyncadd [#allocation3], %s142
      %s145 = sshll.u32 [#allocation2], 4
      %s146 = int_to_ptr.vmem [resolvable:$true] %s145
      %148 = dma.vmem_to_hbm [thread:$0]  %s146, 128, %s3, [#allocation3]
    $region17: #{tpu_custom_call.1} parent=1 // pred_fallthru
      _
    // Predicated region
    $region18: #{tpu_custom_call.1} parent=1 // pred_check
      _
    $region19: #{tpu_custom_call.1} parent=1 // pred_check_branch
      %150 = sbr.rel (0) target = $region21
    $region20: #{tpu_custom_call.1} parent=1 // pred_region
      _
    $region21: #{tpu_custom_call.1} parent=1 // pred_fallthru
      _
    // Predicated region
    $region22: #{tpu_custom_call.1} parent=1 // pred_check
      _
    $region23: #{tpu_custom_call.1} parent=1 // pred_check_branch
      %152 = sbr.rel (0) target = $region25
    $region24: #{tpu_custom_call.1} parent=1 // pred_region
      %153 = dma.done [#allocation3], 128
    $region25: #{tpu_custom_call.1} parent=1 // pred_fallthru
      _
    // Predicated region
    $region26: #{tpu_custom_call.1} parent=1 // pred_check
      _
    $region27: #{tpu_custom_call.1} parent=1 // pred_check_branch
      %155 = sbr.rel (0) target = $region29
    $region28: #{tpu_custom_call.1} parent=1 // pred_region
      _
    $region29: #{tpu_custom_call.1} parent=1 // pred_fallthru
      _
    %156 = vsyncpa [#allocation3], 1

</llo_original>
